<compile_context>
chip_gen: v5e
topology: v5e:2x2
jax: 0.10.0
libtpu: 0.0.40
codegen_flags: <defaults>
</compile_context>

<pallas_src>
import math
from functools import partial

import jax
import jax.numpy as jnp
from jax import lax
from jax.experimental import pallas as pl
from jax.experimental.pallas import tpu as pltpu

F32 = jnp.float32
BF16 = jnp.bfloat16
PHONE_DIM = 256        # TextEncoderV1: emb_phone = nn.Linear(256, hidden_channels)
PITCH_VOCAB = 256      # emb_pitch = nn.Embedding(256, hidden_channels)
WINDOW = 10            # relative-attention window_size used by the RVC Encoder

# Tile constants: sized to stay comfortably inside v7x's 64 MiB VMEM while still
# amortizing the ~0.35us per-grid-step overhead; v5e/v6e (128 MiB) could go larger.
ROW_TILE = 512         # row tile for K==1 (projection / Linear) matmuls
CONV_TILE_T = 512      # output-time tile for K>1 convs


def _rup(n, m):
    return ((n + m - 1) // m) * m


def _apply_post_act(acc, post_act, post_slope):
    if post_act == "leaky":
        return jnp.where(acc >= 0, acc, acc * post_slope)
    if post_act == "relu":
        return jnp.maximum(acc, 0.0)
    if post_act == "tanh":
        return jnp.tanh(acc)
    return acc


# ---------------------------------------------------------------------------
# Fused conv kernels.  Epilogue order: +bias, +cond(gadd), +residual(add),
# tanh*sigmoid gate, activation, *mask(mult), *scale, cast to out dtype.
# ---------------------------------------------------------------------------
def _build_mm_kernel(*, pre_slope, post_act, post_slope, scale,
                     has_bias, has_add, has_mult):
    def kernel(*refs):
        x_ref, w_ref = refs[0], refs[1]
        i = 2
        b_ref = a_ref = m_ref = None
        if has_bias:
            b_ref = refs[i]; i += 1
        if has_add:
            a_ref = refs[i]; i += 1
        if has_mult:
            m_ref = refs[i]; i += 1
        o_ref = refs[i]

        x = x_ref[...]                                   # bf16, no f32 upcast
        if pre_slope is not None:
            x = jnp.where(x >= 0, x, x * pre_slope)
        acc = jnp.dot(x, w_ref[...], preferred_element_type=jnp.float32)
        if has_bias:
            acc = acc + b_ref[...]
        if has_add:
            acc = acc + a_ref[...]
        acc = _apply_post_act(acc, post_act, post_slope)
        if has_mult:
            acc = acc * m_ref[...]
        if scale is not None:
            acc = acc * scale
        o_ref[...] = acc.astype(o_ref.dtype)
    return kernel


def _build_tap_kernel(*, K, dilation, tile_t, pre_slope, post_act, post_slope, gate,
                      c_half, scale, has_bias, has_gadd, has_add, has_mult):
    def kernel(*refs):
        x_ref, w_ref = refs[0], refs[1]
        i = 2
        b_ref = g_ref = a_ref = m_ref = None
        if has_bias:
            b_ref = refs[i]; i += 1
        if has_gadd:
            g_ref = refs[i]; i += 1
        if has_add:
            a_ref = refs[i]; i += 1
        if has_mult:
            m_ref = refs[i]; i += 1
        o_ref = refs[i]

        base = pl.multiple_of(pl.program_id(1) * tile_t, 8)
        acc = None
        for k in range(K):                               # weight-stationary tap accumulation
            xk = x_ref[pl.ds(base + k * dilation, tile_t), :]   # bf16 straight from VMEM
            if pre_slope is not None:                    # fused leaky pre-act, kept in bf16
                xk = jnp.where(xk >= 0, xk, xk * pre_slope)
            part = jnp.dot(xk, w_ref[k], preferred_element_type=jnp.float32)
            acc = part if acc is None else acc + part

        if has_bias:
            acc = acc + b_ref[...]
        if has_gadd:                                     # (1, C) conditioning broadcast over T
            acc = acc + g_ref[...]
        if has_add:                                      # fused residual / embedding add
            acc = acc + a_ref[...]
        if gate:                                         # WaveNet tanh*sigmoid gate
            acc = jnp.tanh(acc[:, :c_half]) * jax.nn.sigmoid(acc[:, c_half:])
        acc = _apply_post_act(acc, post_act, post_slope)
        if has_mult:                                     # fused sequence-mask multiply
            acc = acc * m_ref[...]
        if scale is not None:
            acc = acc * scale
        o_ref[...] = acc.astype(o_ref.dtype)
    return kernel


def _conv_rows(x, w, b, add, mult, pre_slope, post_act, post_slope, scale, out_dtype):
    """K==1 path: fold batch into the matmul M and tile over rows."""
    B, T, Cin = x.shape
    Ct = w.shape[2]
    R = B * T
    rt = min(ROW_TILE, _rup(R, 8))
    Rp = _rup(R, rt)
    Cip, Cop = _rup(Cin, 128), _rup(Ct, 128)

    x2 = jnp.pad(x.reshape(R, Cin), ((0, Rp - R), (0, Cip - Cin))).astype(BF16)
    w2 = jnp.pad(w[0], ((0, Cip - Cin), (0, Cop - Ct))).astype(BF16)
    args = [x2, w2]
    in_specs = [pl.BlockSpec((rt, Cip), lambda i: (i, 0)),
                pl.BlockSpec((Cip, Cop), lambda i: (0, 0))]

    has_bias = b is not None
    if has_bias:
        args.append(jnp.pad(b.astype(F32).reshape(1, Ct), ((0, 0), (0, Cop - Ct))))
        in_specs.append(pl.BlockSpec((1, Cop), lambda i: (0, 0)))
    has_add = add is not None
    if has_add:
        args.append(jnp.pad(add.astype(F32).reshape(R, Ct), ((0, Rp - R), (0, Cop - Ct))))
        in_specs.append(pl.BlockSpec((rt, Cop), lambda i: (i, 0)))
    has_mult = mult is not None
    if has_mult:
        Cm = mult.shape[2]
        Cmp = Cm if Cm == 1 else Cop
        args.append(jnp.pad(mult.astype(F32).reshape(R, Cm), ((0, Rp - R), (0, Cmp - Cm))))
        in_specs.append(pl.BlockSpec((rt, Cmp), lambda i: (i, 0)))

    kern = _build_mm_kernel(pre_slope=pre_slope, post_act=post_act, post_slope=post_slope,
                            scale=scale, has_bias=has_bias, has_add=has_add,
                            has_mult=has_mult)
    out = pl.pallas_call(
        kern,
        out_shape=jax.ShapeDtypeStruct((Rp, Cop), out_dtype),
        grid=(Rp // rt,),
        in_specs=in_specs,
        out_specs=pl.BlockSpec((rt, Cop), lambda i: (i, 0)),
        compiler_params=pltpu.CompilerParams(dimension_semantics=("parallel",)),
    )(*args)
    return out[:R, :Ct].reshape(B, T, Ct)


def _conv_taps(x, w, b, gadd, add, mult, pad, dilation, pre_act_slope, post_act,
               post_slope, gate, scale, out_dtype):
    """K>=1 path: grid=(B, time-tiles).  Input slab stays resident across the time
    axis; output / add / mult stream in tiles of CONV_TILE_T rows."""
    B, T, Cin = x.shape
    K, _, Ct = w.shape
    Tout = T + pad[0] + pad[1] - dilation * (K - 1)
    tile_t = min(CONV_TILE_T, _rup(Tout, 8))
    n_t = -(-Tout // tile_t)
    Top = n_t * tile_t
    Cip = _rup(Cin, 128)
    Tin_p = _rup(Top + dilation * (K - 1), 8)

    if gate:
        Ch = Ct // 2
        Cw = _rup(Ch, 128)

        def pad_halves(a, axis):
            a0, a1 = jnp.split(a, 2, axis=axis)
            widths = [(0, 0)] * a.ndim
            widths[axis] = (0, Cw - Ch)
            return jnp.concatenate([jnp.pad(a0, widths), jnp.pad(a1, widths)], axis=axis)

        wp = pad_halves(jnp.pad(w, ((0, 0), (0, Cip - Cin), (0, 0))), 2)
        Cacc, Cob, Cout = 2 * Cw, Cw, Ch
    else:
        Cw = _rup(Ct, 128)
        wp = jnp.pad(w, ((0, 0), (0, Cip - Cin), (0, Cw - Ct)))
        Cacc, Cob, Cout = Cw, Cw, Ct
        pad_halves = None

    xp = jnp.pad(x, ((0, 0), (pad[0], Tin_p - T - pad[0]), (0, Cip - Cin))).astype(BF16)
    wp = wp.astype(BF16)

    args = [xp, wp]
    in_specs = [pl.BlockSpec((None, Tin_p, Cip), lambda bi, ti: (bi, 0, 0)),
                pl.BlockSpec((K, Cip, Cacc), lambda bi, ti: (0, 0, 0))]

    has_bias = b is not None
    if has_bias:
        bb = b.astype(F32).reshape(1, Ct)
        bb = pad_halves(bb, 1) if gate else jnp.pad(bb, ((0, 0), (0, Cw - Ct)))
        args.append(bb)
        in_specs.append(pl.BlockSpec((1, Cacc), lambda bi, ti: (0, 0)))

    has_gadd = gadd is not None
    if has_gadd:
        gg = gadd.astype(F32)
        gg = pad_halves(gg, 2) if gate else jnp.pad(gg, ((0, 0), (0, 0), (0, Cw - Ct)))
        args.append(gg)
        in_specs.append(pl.BlockSpec((None, 1, Cacc), lambda bi, ti: (bi, 0, 0)))

    has_add = add is not None
    if has_add:
        aa = jnp.pad(add.astype(F32),
                     ((0, 0), (0, Top - add.shape[1]), (0, Cob - add.shape[2])))
        args.append(aa)
        in_specs.append(pl.BlockSpec((None, tile_t, Cob), lambda bi, ti: (bi, ti, 0)))

    has_mult = mult is not None
    if has_mult:
        Cm = mult.shape[2]
        Cmp = Cm if Cm == 1 else Cob
        mm = jnp.pad(mult.astype(F32),
                     ((0, 0), (0, Top - mult.shape[1]), (0, Cmp - Cm)))
        args.append(mm)
        in_specs.append(pl.BlockSpec((None, tile_t, Cmp), lambda bi, ti: (bi, ti, 0)))

    kern = _build_tap_kernel(K=K, dilation=dilation, tile_t=tile_t,
                             pre_slope=pre_act_slope, post_act=post_act,
                             post_slope=post_slope, gate=gate, c_half=Cw, scale=scale,
                             has_bias=has_bias, has_gadd=has_gadd, has_add=has_add,
                             has_mult=has_mult)
    out = pl.pallas_call(
        kern,
        out_shape=jax.ShapeDtypeStruct((B, Top, Cob), out_dtype),
        grid=(B, n_t),
        in_specs=in_specs,
        out_specs=pl.BlockSpec((None, tile_t, Cob), lambda bi, ti: (bi, ti, 0)),
        compiler_params=pltpu.CompilerParams(
            dimension_semantics=("parallel", "parallel")),
    )(*args)
    return out[:, :Tout, :Cout]


@partial(jax.jit, static_argnames=("pad", "dilation", "pre_act_slope", "post_act",
                                   "post_slope", "gate", "scale", "out_dtype"))
def fused_conv(x, w, b=None, gadd=None, add=None, mult=None, *, pad=(0, 0), dilation=1,
               pre_act_slope=None, post_act=None, post_slope=0.1, gate=False,
               scale=None, out_dtype=BF16):
    """torch.nn.Conv1d semantics on (B, T, Cin) slabs; w: (K, Cin, Cout_total).
    bf16 MXU operands, f32 accumulation + epilogue, bf16 (default) writeback."""
    K = w.shape[0]
    if K == 1 and dilation == 1 and pad == (0, 0) and gadd is None and not gate:
        return _conv_rows(x, w, b, add, mult, pre_act_slope, post_act, post_slope,
                          scale, out_dtype)
    return _conv_taps(x, w, b, gadd, add, mult, pad, dilation, pre_act_slope,
                      post_act, post_slope, gate, scale, out_dtype)


@partial(jax.jit, static_argnames=("stride", "padding", "pre_act_slope"))
def fused_conv_transpose(x, w, b, *, stride, padding, pre_act_slope=None):
    """torch ConvTranspose1d: all `stride` polyphase outputs merged into ONE fused conv
    whose output channels are (phase, Cout); phases interleaved by a reshape (x is read
    from HBM once, and the MXU sees a stride-times wider lane-dense N)."""
    B, T, Cin = x.shape
    K, _, Cout = w.shape
    s, p = stride, padding
    Tout = (T - 1) * s + K - 2 * p
    L = -(-Tout // s)
    dset = sorted({d for r in range(s) for d in range(-K, K + 1)
                   if 0 <= p + r - d * s < K})
    d_min, d_max = dset[0], dset[-1]
    nt = d_max - d_min + 1
    zero = jnp.zeros_like(w[0])
    wm = jnp.concatenate(
        [jnp.stack([w[p + r - d * s] if 0 <= p + r - d * s < K else zero
                    for d in range(d_min, d_max + 1)], axis=0)
         for r in range(s)], axis=-1)                    # (nt, Cin, Cout*s)
    bm = jnp.tile(b, s) if b is not None else None
    xin, lpad = (x, -d_min) if d_min <= 0 else (x[:, d_min:, :], 0)
    rpad = max(L + nt - 1 - xin.shape[1] - lpad, 0)
    y = fused_conv(xin, wm, bm, pad=(lpad, rpad), pre_act_slope=pre_act_slope)
    y = y[:, :L, :].reshape(B, L, s, Cout).reshape(B, L * s, Cout)
    return y[:, :Tout, :]


@partial(jax.jit, static_argnames=("stride", "padding"))
def noise_conv_strided(har, w, b, add=None, *, stride, padding):
    """Strided torch Conv1d(1, Cout, K, stride, padding) on the 1-channel NSF source:
    the K strided taps are gathered into a (B, Lout, K) slab and run as one matmul,
    with the skip-connection add fused into the epilogue."""
    B, Ta, _ = har.shape
    K = w.shape[0]
    Lout = (Ta + 2 * padding - K) // stride + 1
    hp = jnp.pad(har[..., 0], ((0, 0), (padding, padding)))
    cols = jnp.stack(
        [lax.slice_in_dim(hp, k, k + (Lout - 1) * stride + 1, stride=stride, axis=1)
         for k in range(K)], axis=-1)
    return fused_conv(cols, w.reshape(1, K, -1), b, add=add)


# ---------------------------------------------------------------------------
# Attention kernel (mask derived in-kernel from scalar-prefetched lengths)
# ---------------------------------------------------------------------------
def _attn_kernel(len_ref, q_ref, k_ref, v_ref, bias_ref, o_ref, p_ref):
    L = len_ref[pl.program_id(0)]
    s = lax.dot_general(q_ref[...], k_ref[...], (((1,), (1,)), ((), ())),
                        preferred_element_type=jnp.float32)
    s = s + bias_ref[...].astype(jnp.float32)
    rows = lax.broadcasted_iota(jnp.int32, s.shape, 0)
    cols = lax.broadcasted_iota(jnp.int32, s.shape, 1)
    s = jnp.where(jnp.logical_and(rows < L, cols < L), s, jnp.float32(-1e4))
    m = jnp.max(s, axis=-1, keepdims=True)
    e = jnp.exp(s - m)
    p = e * pl.reciprocal(jnp.sum(e, axis=-1, keepdims=True), approx=True)
    pb = p.astype(jnp.bfloat16)
    p_ref[...] = pb
    o_ref[...] = jnp.dot(pb, v_ref[...],
                         preferred_element_type=jnp.float32).astype(o_ref.dtype)


@jax.jit
def pl_attention(q, k, v, score_bias, lengths_bh):
    """q,k,v: (B*H, T, dk) bf16 with q pre-scaled by 1/sqrt(dk); score_bias bf16.
    Mask never touches HBM; o / probs are written back as bf16.
    TODO(synk): flash-style key-block tiling + in-kernel relative K/V paths so the
    (T,T) probs never leave VMEM (re-budget for v7x's 64 MiB physical VMEM)."""
    BH, T, D = q.shape
    Tp, Dp = _rup(T, 128), _rup(D, 128)
    padqkv = lambda t: jnp.pad(t, ((0, 0), (0, Tp - T), (0, Dp - D))).astype(BF16)
    bp = jnp.pad(score_bias.astype(BF16), ((0, 0), (0, Tp - T), (0, Tp - T)))
    spec_qkv = pl.BlockSpec((None, Tp, Dp), lambda i, lens: (i, 0, 0))
    spec_tt = pl.BlockSpec((None, Tp, Tp), lambda i, lens: (i, 0, 0))
    o, p = pl.pallas_call(
        _attn_kernel,
        out_shape=(jax.ShapeDtypeStruct((BH, Tp, Dp), BF16),
                   jax.ShapeDtypeStruct((BH, Tp, Tp), BF16)),
        grid_spec=pltpu.PrefetchScalarGridSpec(
            num_scalar_prefetch=1, grid=(BH,),
            in_specs=[spec_qkv, spec_qkv, spec_qkv, spec_tt],
            out_specs=(spec_qkv, spec_tt)),
        compiler_params=pltpu.CompilerParams(
            dimension_semantics=("parallel",),
            vmem_limit_bytes=48 * 1024 * 1024),
    )(lengths_bh.astype(jnp.int32), padqkv(q), padqkv(k), padqkv(v), bp)
    return o[:, :T, :D], p[:, :T, :T]


# ---------------------------------------------------------------------------
# Fused residual-add + channel LayerNorm (+ sequence-mask multiply)
# ---------------------------------------------------------------------------
def _add_ln_kernel(x_ref, y_ref, g_ref, b_ref, m_ref, o_ref, *, n_ch):
    v = x_ref[...].astype(F32) + y_ref[...].astype(F32)
    lane_ok = lax.broadcasted_iota(jnp.int32, v.shape, 1) < n_ch
    mean = jnp.sum(v, axis=-1, keepdims=True) * (1.0 / n_ch)
    c = jnp.where(lane_ok, v - mean, 0.0)                 # two-pass (mean-subtracted) var
    var = jnp.sum(c * c, axis=-1, keepdims=True) * (1.0 / n_ch)
    out = c * lax.rsqrt(var + 1e-5) * g_ref[...] + b_ref[...]
    o_ref[...] = (out * m_ref[...]).astype(o_ref.dtype)


@jax.jit
def pl_add_layernorm(x, y, gamma, beta, mask):
    """LayerNorm over channels of (x + y), followed by the fused sequence-mask mult."""
    B, T, C = x.shape
    Tp, Cp = _rup(T, 8), _rup(C, 128)
    pad3 = lambda t: jnp.pad(t.astype(BF16), ((0, 0), (0, Tp - T), (0, Cp - C)))
    gp = jnp.pad(gamma.astype(F32), (0, Cp - C)).reshape(1, Cp)
    bp = jnp.pad(beta.astype(F32), (0, Cp - C)).reshape(1, Cp)
    mp = jnp.pad(mask.astype(F32), ((0, 0), (0, Tp - T), (0, 0)))
    out = pl.pallas_call(
        partial(_add_ln_kernel, n_ch=C),
        out_shape=jax.ShapeDtypeStruct((B, Tp, Cp), BF16),
        grid=(B,),
        in_specs=[pl.BlockSpec((None, Tp, Cp), lambda i: (i, 0, 0)),
                  pl.BlockSpec((None, Tp, Cp), lambda i: (i, 0, 0)),
                  pl.BlockSpec((1, Cp), lambda i: (0, 0)),
                  pl.BlockSpec((1, Cp), lambda i: (0, 0)),
                  pl.BlockSpec((None, Tp, 1), lambda i: (i, 0, 0))],
        out_specs=pl.BlockSpec((None, Tp, Cp), lambda i: (i, 0, 0)),
        compiler_params=pltpu.CompilerParams(dimension_semantics=("parallel",)),
    )(pad3(x), pad3(y), gp, bp, mp)
    return out[:, :T, :C]


# ---------------------------------------------------------------------------
# JAX glue helpers
# ---------------------------------------------------------------------------
def sequence_mask(lengths, max_len):
    return (jnp.arange(max_len)[None, :] < lengths[:, None]).astype(F32)


def get_relative_embeddings(rel_emb, length):
    pad_length = max(length - (WINDOW + 1), 0)
    slice_start = max((WINDOW + 1) - length, 0)
    slice_end = slice_start + 2 * length - 1
    if pad_length > 0:
        rel_emb = jnp.pad(rel_emb, ((0, 0), (pad_length, pad_length), (0, 0)))
    return rel_emb[:, slice_start:slice_end]


def rel_to_abs(x):
    b, h, l, _ = x.shape
    x = jnp.pad(x, ((0, 0), (0, 0), (0, 0), (0, 1)))
    x_flat = x.reshape(b, h, l * 2 * l)
    x_flat = jnp.pad(x_flat, ((0, 0), (0, 0), (0, l - 1)))
    return x_flat.reshape(b, h, l + 1, 2 * l - 1)[:, :, :l, l - 1:]


def abs_to_rel(x):
    b, h, l, _ = x.shape
    x = jnp.pad(x, ((0, 0), (0, 0), (0, 0), (0, l - 1)))
    x_flat = x.reshape(b, h, l * l + l * (l - 1))
    x_flat = jnp.pad(x_flat, ((0, 0), (0, 0), (l, 0)))
    return x_flat.reshape(b, h, l, 2 * l)[:, :, :, 1:]


def rand_slice_segments(x, x_lengths, segment_size, key):
    # x: (B, T, C)
    B, T, C = x.shape
    ids_str_max = jnp.maximum(x_lengths - segment_size + 1, 1)
    ids_str = (jax.random.uniform(key, (B,)) * ids_str_max).astype(jnp.int32)
    segs = jnp.stack([lax.dynamic_slice(x[b], (ids_str[b], 0), (segment_size, C))
                      for b in range(B)], axis=0)
    return segs, ids_str


def slice_segments_1d(x, ids_str, segment_size):
    B, _ = x.shape
    return jnp.stack([lax.dynamic_slice(x[b], (ids_str[b],), (segment_size,))
                      for b in range(B)], axis=0)


def sine_gen(f0, upp, sr, key, sine_amp=0.1, noise_std=0.003, voiced_threshold=0.0):
    # TODO(synk): matches RVC SineGenerator for harmonic_num=0 (single sine); the
    # frame->audio phase interpolation approximates F.interpolate(linear/nearest).
    B, Tf = f0.shape
    Ta = Tf * upp
    rad = (f0 / sr) % 1.0
    rad_up = jnp.repeat(rad, upp, axis=1)
    phase = jnp.cumsum(rad, axis=1) * upp
    if Ta > 1 and Tf > 1:
        pos = jnp.arange(Ta) * ((Tf - 1) / (Ta - 1))
        lo = jnp.floor(pos).astype(jnp.int32)
        hi = jnp.minimum(lo + 1, Tf - 1)
        frac = (pos - lo).astype(F32)
        phase_up = phase[:, lo] * (1.0 - frac) + phase[:, hi] * frac
    else:
        phase_up = jnp.repeat(phase, upp, axis=1)
    phase_up = phase_up % 1.0
    wrap = (phase_up[:, 1:] - phase_up[:, :-1]) < 0.0
    shift = jnp.concatenate([jnp.zeros((B, 1), F32), -1.0 * wrap.astype(F32)], axis=1)
    sine = jnp.sin(jnp.cumsum(rad_up + shift, axis=1) * (2.0 * math.pi)) * sine_amp
    uv = jnp.repeat((f0 > voiced_threshold).astype(F32), upp, axis=1)
    noise_amp = uv * noise_std + (1.0 - uv) * (sine_amp / 3.0)
    noise = noise_amp * jax.random.normal(key, sine.shape, F32)
    return (sine * uv + noise)[:, :, None]


# ---------------------------------------------------------------------------
# Modules (forward passes, internal layout (B, T, C), bf16 activations)
# ---------------------------------------------------------------------------
def multi_head_attention(lp, x, lengths, n_heads):
    B, T, H = x.shape
    dk = H // n_heads
    qkv = fused_conv(x, lp['qkv_w'], lp['qkv_b'])               # q pre-scaled by 1/sqrt(dk)

    def heads(t):
        return t.reshape(B, T, n_heads, dk).transpose(0, 2, 1, 3).reshape(B * n_heads, T, dk)

    qh, kh, vh = heads(qkv[..., :H]), heads(qkv[..., H:2 * H]), heads(qkv[..., 2 * H:])

    # TODO(synk): fold the relative K/V matmuls + skews fully into _attn_kernel so the
    # (T,T) tensors never round-trip HBM; they travel as bf16 for now.
    rel_k = get_relative_embeddings(lp['rel_k'], T)             # (1, 2T-1, dk)
    rel_logits = fused_conv(qh, jnp.transpose(rel_k, (0, 2, 1)))
    score_bias = rel_to_abs(rel_logits.reshape(B, n_heads, T, 2 * T - 1))

    lens_bh = jnp.repeat(lengths.astype(jnp.int32), n_heads)
    o, p_attn = pl_attention(qh, kh, vh, score_bias.reshape(B * n_heads, T, T), lens_bh)

    rel_w = abs_to_rel(p_attn.reshape(B, n_heads, T, T))        # bf16 (B,h,T,2T-1)
    rel_v = get_relative_embeddings(lp['rel_v'], T)
    o_rel = fused_conv(rel_w.reshape(B * n_heads, T, 2 * T - 1), rel_v)
    o = (o + o_rel).reshape(B, n_heads, T, dk).transpose(0, 2, 1, 3).reshape(B, T, H)
    return fused_conv(o, lp['o_w'], lp['o_b'])


def ffn_fwd(lp, x, x_mask, kernel_size):
    padl, padr = (kernel_size - 1) // 2, kernel_size // 2
    h = fused_conv(x, lp['ffn1_w'], lp['ffn1_b'], mult=x_mask,
                   pad=(padl, padr), post_act='relu')
    return fused_conv(h, lp['ffn2_w'], lp['ffn2_b'], mult=x_mask, pad=(padl, padr))


def encoder_fwd(p, x, x_mask, lengths, n_heads, kernel_size):
    # TODO(synk): dropout layers are identity (p_dropout = 0.0 in this config).
    # x arrives already masked (mask folded into the embedding-conv epilogue); each
    # layernorm re-applies the mask, so `x * x_mask` never appears as a standalone op.
    for lp in p['layers']:
        y = multi_head_attention(lp, x, lengths, n_heads)
        x = pl_add_layernorm(x, y, lp['ln1_g'], lp['ln1_b'], x_mask)
        y = ffn_fwd(lp, x, x_mask, kernel_size)
        x = pl_add_layernorm(x, y, lp['ln2_g'], lp['ln2_b'], x_mask)
    return x


def text_encoder_fwd(p, phone, pitch, lengths, cfg):
    B, T, _ = phone.shape
    H, inter = cfg['hidden_channels'], cfg['inter_channels']
    x_mask = sequence_mask(lengths, T)[:, :, None]
    pe = p['emb_pitch'][pitch] * math.sqrt(H)                   # emb_pitch lookup (glue)
    # emb_w/emb_b are pre-scaled by sqrt(H) at init; lrelu(0.1) + mask fused in epilogue.
    x = fused_conv(phone, p['emb_w'], p['emb_b'], add=pe, mult=x_mask,
                   post_act='leaky', post_slope=0.1)
    x = encoder_fwd(p, x, x_mask, lengths, cfg['n_heads'], cfg['kernel_size'])
    stats = fused_conv(x, p['proj_w'], p['proj_b'], mult=x_mask, out_dtype=F32)
    return stats[..., :inter], stats[..., inter:], x_mask


def wn_fwd(p, x, x_mask, g, hidden, kernel_size, dilation_rate):
    n_layers = len(p['in_w'])
    g_all = fused_conv(g, p['cond_w'], p['cond_b'])             # (B, 1, 2H*L)
    output = None
    for i in range(n_layers):
        dil = dilation_rate ** i
        pad = (kernel_size * dil - dil) // 2
        g_l = g_all[:, :, i * 2 * hidden:(i + 1) * 2 * hidden]  # (B,1,2H) broadcast in-kernel
        acts = fused_conv(x, p['in_w'][i], p['in_b'][i], gadd=g_l,
                          pad=(pad, pad), dilation=dil, gate=True)
        if i == n_layers - 1:
            # last skip add + final * x_mask folded into the res_skip conv epilogue
            return fused_conv(acts, p['rs_w'][i], p['rs_b'][i], add=output, mult=x_mask)
        rs = fused_conv(acts, p['rs_w'][i], p['rs_b'][i])
        x = (x + rs[..., :hidden]) * x_mask
        output = rs[..., hidden:] if output is None else output + rs[..., hidden:]
    return output


def posterior_encoder_fwd(p, y, y_lengths, g, cfg, key):
    B, T, _ = y.shape
    H, inter = cfg['hidden_channels'], cfg['inter_channels']
    y_mask = sequence_mask(y_lengths, T)[:, :, None]
    x = fused_conv(y, p['pre_w'], p['pre_b'], mult=y_mask)
    x = wn_fwd(p['wn'], x, y_mask, g, H, 5, 1)
    stats = fused_conv(x, p['proj_w'], p['proj_b'], mult=y_mask, out_dtype=F32)
    m, logs = stats[..., :inter], stats[..., inter:]
    z = (m + jax.random.normal(key, m.shape, F32) * jnp.exp(logs)) * y_mask
    return z, m, logs, y_mask


def flow_fwd(p, x, x_mask, g, cfg):
    half = cfg['inter_channels'] // 2
    H = cfg['hidden_channels']
    for fp in p:                                                # 4 x (coupling + flip)
        x0, x1 = x[..., :half], x[..., half:]
        h = fused_conv(x0, fp['pre_w'], fp['pre_b'], mult=x_mask)
        h = wn_fwd(fp['wn'], h, x_mask, g, H, 5, 1)
        # mean_only coupling: x1 = post(h)*mask + x1*mask == (post(h) + x1) * mask
        x1 = fused_conv(h, fp['post_w'], fp['post_b'], add=x1, mult=x_mask, out_dtype=F32)
        x = jnp.concatenate([x0, x1], axis=-1)
        x = jnp.flip(x, axis=-1)                                # modules.Flip (channel dim)
    return x


def resblock1_fwd(p, x, k, dils, out_scale=None):
    n = len(dils)
    for j, d in enumerate(dils):
        xt = fused_conv(x, p['c1_w'][j], p['c1_b'][j],
                        pad=((k * d - d) // 2,) * 2, dilation=d, pre_act_slope=0.1)
        x = fused_conv(xt, p['c2_w'][j], p['c2_b'][j],
                       pad=((k - 1) // 2,) * 2, dilation=1, pre_act_slope=0.1, add=x,
                       scale=(out_scale if j == n - 1 else None))
    return x


def generator_fwd(p, x, f0, g, cfg, key):
    # GeneratorNSF: harmonic sine source + HiFiGAN upsampling stack.
    upp = 1
    for r in cfg['upsample_rates']:
        upp *= r
    sine = sine_gen(f0, upp, cfg['sr'], key)
    har = jnp.tanh(sine * p['src_l_w'] + p['src_l_b'])          # SourceModuleHnNSF linear+tanh

    cond_g = fused_conv(g, p['cond_w'], p['cond_b'])            # (B,1,uic)
    x = fused_conv(x, p['pre_w'], p['pre_b'], pad=(3, 3), gadd=cond_g)

    nk = len(cfg['resblock_kernel_sizes'])
    rates = cfg['upsample_rates']
    for i, (u, ku) in enumerate(zip(rates, cfg['upsample_kernel_sizes'])):
        x = fused_conv_transpose(x, p['ups_w'][i], p['ups_b'][i],
                                 stride=u, padding=(ku - u) // 2, pre_act_slope=0.1)
        if i + 1 < len(rates):
            sf = 1
            for r in rates[i + 1:]:
                sf *= r
            # x = x + noise_conv(har): skip add fused into the noise-conv epilogue
            x = noise_conv_strided(har, p['noise_w'][i], p['noise_b'][i], x,
                                   stride=sf, padding=sf // 2)
        else:
            x = fused_conv(har, p['noise_w'][i], p['noise_b'][i], add=x)
        xs = None
        for j, (k, dils) in enumerate(zip(cfg['resblock_kernel_sizes'],
                                          cfg['resblock_dilation_sizes'])):
            # 1/nk averaging folded into each resblock's final conv epilogue
            xr = resblock1_fwd(p['res'][i][j], x, k, tuple(dils), out_scale=1.0 / nk)
            xs = xr if xs is None else xs + xr
        x = xs
    # final F.leaky_relu (slope 0.01) + conv_post (bias=False) + tanh, fully fused.
    x = fused_conv(x, p['post_w'], None, pad=(3, 3), pre_act_slope=0.01,
                   post_act='tanh', out_dtype=F32)
    return x                                                    # (B, T_audio, 1)


def synthesizer_forward(params, cfg, phone, phone_lengths, pitch, pitchf, y, y_lengths, ds, rng):
    k_post, k_slice, k_sine = jax.random.split(rng, 3)
    g = params['emb_g'][ds][:, None, :]                         # (B, 1, gin)
    m_p, logs_p, x_mask = text_encoder_fwd(params['enc_p'], phone, pitch, phone_lengths, cfg)
    z, m_q, logs_q, y_mask = posterior_encoder_fwd(
        params['enc_q'], jnp.transpose(y, (0, 2, 1)), y_lengths, g, cfg, k_post)
    z_p = flow_fwd(params['flow'], z, y_mask, g, cfg)
    z_slice, ids_slice = rand_slice_segments(z, y_lengths, cfg['segment_size'], k_slice)
    pitchf_slice = slice_segments_1d(pitchf, ids_slice, cfg['segment_size'])
    o = generator_fwd(params['dec'], z_slice, pitchf_slice, g, cfg, k_sine)
    tr = lambda t: jnp.transpose(t, (0, 2, 1))                  # back to torch (B, C, T)
    return (tr(o), ids_slice, tr(x_mask), tr(y_mask),
            (tr(z), tr(z_p), tr(m_p), tr(logs_p), tr(m_q), tr(logs_q)))


# ---------------------------------------------------------------------------
# Deterministic parameter initialization (kernel layout: conv w = (K, Cin, Cout))
# TODO(synk): weight_norm is a training-time reparameterization; forward math uses the
# already-materialized weights initialized here.
# ---------------------------------------------------------------------------
class Init:
    def __init__(self, key):
        self._key, self._n = key, 0

    def _next(self):
        self._n += 1
        return jax.random.fold_in(self._key, self._n)

    def normal(self, shape, scale=0.05):
        return scale * jax.random.normal(self._next(), shape, F32)


def init_enc_p(ini, cfg):
    H, F_, heads = cfg['hidden_channels'], cfg['filter_channels'], cfg['n_heads']
    L, K, inter = cfg['n_layers'], cfg['kernel_size'], cfg['inter_channels']
    dk = H // heads
    scale = 1.0 / math.sqrt(dk)
    layers = []
    for _ in range(L):
        wq, wk_, wv = (ini.normal((1, H, H)) for _ in range(3))
        bq, bk, bv = (ini.normal((H,)) for _ in range(3))
        layers.append({
            # conv_q/k/v fused into one 1x1 projection; the q block pre-scaled by 1/sqrt(dk)
            'qkv_w': jnp.concatenate([wq * scale, wk_, wv], axis=2),
            'qkv_b': jnp.concatenate([bq * scale, bk, bv], axis=0),
            'o_w': ini.normal((1, H, H)), 'o_b': ini.normal((H,)),
            'rel_k': ini.normal((1, 2 * WINDOW + 1, dk), dk ** -0.5),
            'rel_v': ini.normal((1, 2 * WINDOW + 1, dk), dk ** -0.5),
            'ln1_g': jnp.ones((H,), F32), 'ln1_b': jnp.zeros((H,), F32),
            'ffn1_w': ini.normal((K, H, F_)), 'ffn1_b': ini.normal((F_,)),
            'ffn2_w': ini.normal((K, F_, H)), 'ffn2_b': ini.normal((H,)),
            'ln2_g': jnp.ones((H,), F32), 'ln2_b': jnp.zeros((H,), F32),
        })
    sqrt_h = math.sqrt(H)
    return {
        # emb_phone Linear(256, H) pre-scaled by sqrt(H); emb_pitch Embedding(256, H)
        'emb_w': ini.normal((1, PHONE_DIM, H)) * sqrt_h,
        'emb_b': ini.normal((H,)) * sqrt_h,
        'emb_pitch': ini.normal((PITCH_VOCAB, H)),
        'layers': layers,
        'proj_w': ini.normal((1, H, 2 * inter)), 'proj_b': ini.normal((2 * inter,)),
    }


def init_wn(ini, hidden, k, n_layers, gin):
    return {
        'cond_w': ini.normal((1, gin, 2 * hidden * n_layers)),
        'cond_b': ini.normal((2 * hidden * n_layers,)),
        'in_w': [ini.normal((k, hidden, 2 * hidden)) for _ in range(n_layers)],
        'in_b': [ini.normal((2 * hidden,)) for _ in range(n_layers)],
        'rs_w': [ini.normal((1, hidden, 2 * hidden if i < n_layers - 1 else hidden))
                 for i in range(n_layers)],
        'rs_b': [ini.normal((2 * hidden if i < n_layers - 1 else hidden,))
                 for i in range(n_layers)],
    }


def init_dec(ini, cfg):
    uic = cfg['upsample_initial_channel']
    rates = cfg['upsample_rates']
    p = {'pre_w': ini.normal((7, cfg['inter_channels'], uic)), 'pre_b': ini.normal((uic,)),
         'cond_w': ini.normal((1, cfg['gin_channels'], uic)), 'cond_b': ini.normal((uic,)),
         'src_l_w': ini.normal((1,)), 'src_l_b': ini.normal((1,))}
    ups_w, ups_b, noise_w, noise_b, res = [], [], [], [], []
    ch = uic
    for i, (u, ku) in enumerate(zip(rates, cfg['upsample_kernel_sizes'])):
        cin, ch = uic // (2 ** i), uic // (2 ** (i + 1))
        ups_w.append(ini.normal((ku, cin, ch)))          # torch ConvTranspose1d (cin,ch,ku)
        ups_b.append(ini.normal((ch,)))
        if i + 1 < len(rates):
            sf = 1
            for r in rates[i + 1:]:
                sf *= r
            noise_w.append(ini.normal((2 * sf, 1, ch)))
        else:
            noise_w.append(ini.normal((1, 1, ch)))
        noise_b.append(ini.normal((ch,)))
        blocks = []
        for k, dils in zip(cfg['resblock_kernel_sizes'], cfg['resblock_dilation_sizes']):
            blocks.append({'c1_w': [ini.normal((k, ch, ch)) for _ in dils],
                           'c1_b': [ini.normal((ch,)) for _ in dils],
                           'c2_w': [ini.normal((k, ch, ch)) for _ in dils],
                           'c2_b': [ini.normal((ch,)) for _ in dils]})
        res.append(blocks)
    p.update(ups_w=ups_w, ups_b=ups_b, noise_w=noise_w, noise_b=noise_b, res=res)
    p['post_w'] = ini.normal((7, ch, 1))                 # conv_post, bias=False
    return p


def init_params(cfg, key):
    ini = Init(key)
    H, inter, gin = cfg['hidden_channels'], cfg['inter_channels'], cfg['gin_channels']
    return {
        'emb_g': ini.normal((cfg['spk_embed_dim'], gin)),
        'enc_p': init_enc_p(ini, cfg),
        'enc_q': {'pre_w': ini.normal((1, cfg['spec_channels'], H)), 'pre_b': ini.normal((H,)),
                  'wn': init_wn(ini, H, 5, 16, gin),
                  'proj_w': ini.normal((1, H, 2 * inter)), 'proj_b': ini.normal((2 * inter,))},
        'flow': [{'pre_w': ini.normal((1, inter // 2, H)), 'pre_b': ini.normal((H,)),
                  'wn': init_wn(ini, H, 5, 3, gin),
                  'post_w': ini.normal((1, H, inter // 2)), 'post_b': ini.normal((inter // 2,))}
                 for _ in range(4)],
        'dec': init_dec(ini, cfg),
    }


# ---------------------------------------------------------------------------
CFG = dict(
    spec_channels=32, segment_size=8, inter_channels=16, hidden_channels=32,
    filter_channels=64, n_heads=2, n_layers=2, kernel_size=3, p_dropout=0.0,
    resblock="1", resblock_kernel_sizes=[3, 5],
    resblock_dilation_sizes=[[1, 3, 5], [1, 3, 5]],
    upsample_rates=[4, 4], upsample_initial_channel=32, upsample_kernel_sizes=[8, 8],
    spk_embed_dim=4, gin_channels=16, sr=16000,
)


if __name__ == "__main__":
    key = jax.random.PRNGKey(0)
    k_param, k_phone, k_pitch, k_pitchf, k_y, k_fwd = jax.random.split(key, 6)
    params = init_params(CFG, k_param)

    B, T_phone, T_spec = 2, 24, 24
    phone = jax.random.normal(k_phone, (B, T_phone, PHONE_DIM), F32)
    pitch = jax.random.randint(k_pitch, (B, T_phone), 1, PITCH_VOCAB)
    pitchf = jax.random.uniform(k_pitchf, (B, T_spec), F32, 80.0, 400.0)
    phone_lengths = jnp.array([T_phone, T_phone - 4], jnp.int32)
    y = jax.random.normal(k_y, (B, CFG['spec_channels'], T_spec), F32)
    y_lengths = jnp.array([T_spec, T_spec - 6], jnp.int32)
    ds = jnp.array([0, 3], jnp.int32)

    out = synthesizer_forward(params, CFG, phone, phone_lengths, pitch, pitchf,
                              y, y_lengths, ds, k_fwd)
    out = jax.block_until_ready(out)
    o, ids_slice, x_mask, y_mask, (z, z_p, m_p, logs_p, m_q, logs_q) = out

    up_total = 1
    for r in CFG['upsample_rates']:
        up_total *= r
    assert o.shape == (B, 1, CFG['segment_size'] * up_total)
    assert z.shape == (B, CFG['inter_channels'], T_spec)
    assert z_p.shape == z.shape and m_q.shape == z.shape and logs_q.shape == z.shape
    assert m_p.shape == (B, CFG['inter_channels'], T_phone)
    assert logs_p.shape == m_p.shape
    assert x_mask.shape == (B, 1, T_phone) and y_mask.shape == (B, 1, T_spec)
    assert ids_slice.shape == (B,)
    assert bool(jnp.all(jnp.isfinite(o)))
    print("KERNEL_OK")
</pallas_src>

<mosaic_0001>
module attributes {stable_mosaic.version = 11 : i64} {
  func.func @kernel(%arg0: i32, %arg1: memref<48x256xbf16, #tpu.memory_space<vmem>>, %arg2: memref<256x128xbf16, #tpu.memory_space<vmem>>, %arg3: memref<1x128xf32, #tpu.memory_space<vmem>>, %arg4: memref<48x128xf32, #tpu.memory_space<vmem>>, %arg5: memref<48x1xf32, #tpu.memory_space<vmem>>, %arg6: memref<48x128xbf16, #tpu.memory_space<vmem>>) attributes {dimension_semantics = [#tpu.dimension_semantics<parallel>], iteration_bounds = array<i64: 1>, scalar_prefetch = 0 : i64, scratch_operands = 0 : i64, tpu.core_type = #tpu.core_type<tc>, window_params = [{transform_indices = @transform_0, window_bounds = array<i64: 48, 256>}, {pipeline_mode = #tpu.pipeline_mode<synchronous>, transform_indices = @transform_1, window_bounds = array<i64: 256, 128>}, {pipeline_mode = #tpu.pipeline_mode<synchronous>, transform_indices = @transform_2, window_bounds = array<i64: 1, 128>}, {transform_indices = @transform_3, window_bounds = array<i64: 48, 128>}, {transform_indices = @transform_4, window_bounds = array<i64: 48, 1>}, {transform_indices = @transform_5, window_bounds = array<i64: 48, 128>}]} {
    %c0 = arith.constant 0 : index
    %c0_0 = arith.constant 0 : index
    %0 = vector.load %arg1[%c0, %c0_0] : memref<48x256xbf16, #tpu.memory_space<vmem>>, vector<48x256xbf16>
    %c0_1 = arith.constant 0 : index
    %c0_2 = arith.constant 0 : index
    %1 = vector.load %arg2[%c0_1, %c0_2] : memref<256x128xbf16, #tpu.memory_space<vmem>>, vector<256x128xbf16>
    %cst = arith.constant dense<0.000000e+00> : vector<48x128xf32>
    %2 = tpu.matmul %0, %1, %cst {dimension_numbers = #tpu.dot_dimension_numbers<[1], [0], [0], [1], [0, 0, 1, 1], [], []>} : vector<48x256xbf16>, vector<256x128xbf16>, vector<48x128xf32> -> vector<48x128xf32>
    %c0_3 = arith.constant 0 : index
    %c0_4 = arith.constant 0 : index
    %3 = vector.load %arg3[%c0_3, %c0_4] : memref<1x128xf32, #tpu.memory_space<vmem>>, vector<1x128xf32>
    %4 = vector.broadcast %3 : vector<1x128xf32> to vector<48x128xf32>
    %5 = arith.addf %2, %4 : vector<48x128xf32>
    %c0_5 = arith.constant 0 : index
    %c0_6 = arith.constant 0 : index
    %6 = vector.load %arg4[%c0_5, %c0_6] : memref<48x128xf32, #tpu.memory_space<vmem>>, vector<48x128xf32>
    %7 = arith.addf %5, %6 : vector<48x128xf32>
    %cst_7 = arith.constant 0.000000e+00 : f32
    %8 = vector.broadcast %cst_7 : f32 to vector<48x128xf32>
    %9 = arith.cmpf oge, %7, %8 : vector<48x128xf32>
    %cst_8 = arith.constant 1.000000e-01 : f32
    %10 = vector.broadcast %cst_8 : f32 to vector<48x128xf32>
    %11 = arith.mulf %7, %10 : vector<48x128xf32>
    %12 = arith.select %9, %7, %11 : vector<48x128xi1>, vector<48x128xf32>
    %c0_9 = arith.constant 0 : index
    %c0_10 = arith.constant 0 : index
    %13 = vector.load %arg5[%c0_9, %c0_10] : memref<48x1xf32, #tpu.memory_space<vmem>>, vector<48x1xf32>
    %14 = vector.broadcast %13 : vector<48x1xf32> to vector<48x128xf32>
    %15 = arith.mulf %12, %14 : vector<48x128xf32>
    %16 = arith.truncf %15 : vector<48x128xf32> to vector<48x128xbf16>
    %c0_11 = arith.constant 0 : index
    %c0_12 = arith.constant 0 : index
    %17 = vector.load %arg6[%c0_11, %c0_12] : memref<48x128xbf16, #tpu.memory_space<vmem>>, vector<48x128xbf16>
    tpu.vector_store %arg6[%c0_11, %c0_12], %16 {strides = array<i32>} : memref<48x128xbf16, #tpu.memory_space<vmem>>, vector<48x128xbf16>,
    return
  }
  func.func @transform_0(%arg0: i32) -> (i32, i32) {
    %c0_i32 = arith.constant 0 : i32
    %c0_i32_0 = arith.constant 0 : i32
    return %arg0, %c0_i32 : i32, i32
  }
  func.func @transform_1(%arg0: i32) -> (i32, i32) {
    %c0_i32 = arith.constant 0 : i32
    %c0_i32_0 = arith.constant 0 : i32
    %c0_i32_1 = arith.constant 0 : i32
    return %c0_i32, %c0_i32_0 : i32, i32
  }
  func.func @transform_2(%arg0: i32) -> (i32, i32) {
    %c0_i32 = arith.constant 0 : i32
    %c0_i32_0 = arith.constant 0 : i32
    %c0_i32_1 = arith.constant 0 : i32
    return %c0_i32, %c0_i32_0 : i32, i32
  }
  func.func @transform_3(%arg0: i32) -> (i32, i32) {
    %c0_i32 = arith.constant 0 : i32
    %c0_i32_0 = arith.constant 0 : i32
    return %arg0, %c0_i32 : i32, i32
  }
  func.func @transform_4(%arg0: i32) -> (i32, i32) {
    %c0_i32 = arith.constant 0 : i32
    %c0_i32_0 = arith.constant 0 : i32
    return %arg0, %c0_i32 : i32, i32
  }
  func.func @transform_5(%arg0: i32) -> (i32, i32) {
    %c0_i32 = arith.constant 0 : i32
    %c0_i32_0 = arith.constant 0 : i32
    return %arg0, %c0_i32 : i32, i32
  }
}

</mosaic_0001>

<llo_original>
// kernel: fused_conv.1
$region0: #{fused_conv.1}
  #allocation0 [shape = 'u32[]', space=smem, size = 0x4, offset = 0x4, fixed_abs, tag = 'smem constant byte address 0x4 - core index']
  #allocation1 [shape = 'u32[72,128]{1,0:T(1,128)}', space=vmem, size = 0x9000, scoped, tag = 'internal scratch']
  %s0 = inlined_call_operand.vmem [shape: bf16[48,256], index: 0, kind: input, shape index: {}]
  %s1 = inlined_call_operand.vmem [shape: bf16[256,128], index: 1, kind: input, shape index: {}]
  %s2 = inlined_call_operand.vmem [shape: f32[1,128], index: 2, kind: input, shape index: {}]
  %s3 = inlined_call_operand.vmem [shape: f32[48,128], index: 3, kind: input, shape index: {}]
  %s4 = inlined_call_operand.vmem [shape: f32[48,1], index: 4, kind: input, shape index: {}]
  %s5 = inlined_call_operand.hbm [shape: bf16[48,128], index: 5, kind: output, shape index: {}]
  %s6 = sld [smem:[#allocation0]]
  $region30: #{fused_conv.1} parent=0
    _
  %s8 = ssub.s32 1, %s6
  %s9 = scalar_select 0, %s8, %s6
  $region1: #{fused_conv.1} parent=0
    #allocation2 [shape = 'u8[12288]{0}', space=vmem, size = 0x3000, scoped, tag = 'output window, operand 0, single buffered']
    #allocation3 [shape = 's32[1]{0}', space=sflag, size = 0x4, scoped, tag = 'scoped memory for fused_conv.1']
    %10 = vsyncpa [#allocation3], 0
    // Predicated region
    $region2: #{fused_conv.1} parent=1 // pred_check
      _
    $region3: #{fused_conv.1} parent=1 // pred_check_branch
      %12 = sbr.rel (0) target = $region5
    $region4: #{fused_conv.1} parent=1 // pred_region
      _
    $region5: #{fused_conv.1} parent=1 // pred_fallthru
      _
    // Predicated region
    $region6: #{fused_conv.1} parent=1 // pred_check
      _
    $region7: #{fused_conv.1} parent=1 // pred_check_branch
      %14 = sbr.rel (0) target = $region9
    $region8: #{fused_conv.1} parent=1 // pred_region
      _
    $region9: #{fused_conv.1} parent=1 // pred_fallthru
      _
    // Predicated region
    $region10: #{fused_conv.1} parent=1 // pred_check
      _
    $region11: #{fused_conv.1} parent=1 // pred_check_branch
      %16 = sbr.rel (0) target = $region13
    $region12: #{fused_conv.1} parent=1 // pred_region
      _
    $region13: #{fused_conv.1} parent=1 // pred_fallthru
      _
    // Predicated region
    $region14: #{fused_conv.1} parent=1 // pred_check
      _
    $region15: #{fused_conv.1} parent=1 // pred_check_branch
      %18 = sbr.rel (0) target = $region17
    $region16: #{fused_conv.1} parent=1 // pred_region
      _
    $region17: #{fused_conv.1} parent=1 // pred_fallthru
      _
    // Predicated region
    $region18: #{fused_conv.1} parent=1 // pred_check
      _
    $region19: #{fused_conv.1} parent=1 // pred_check_branch
      %20 = sbr.rel (0) target = $region21
    $region20: #{fused_conv.1} parent=1 // pred_region
      _
    $region21: #{fused_conv.1} parent=1 // pred_fallthru
      _
    %v21 = vld [vmem:[%s0] sm:$0xff]
    %v22 = vld [vmem:[%s0 + $0x8] sm:$0xff]
    %v23 = vld [vmem:[%s0 + $0x10] sm:$0xff]
    %v24 = vld [vmem:[%s0 + $0x18] sm:$0xff]
    %v25 = vld [vmem:[%s0 + $0x20] sm:$0xff]
    %v26 = vld [vmem:[%s0 + $0x28] sm:$0xff]
    %v27 = vld [vmem:[%s1] sm:$0xf]
    %v28 = vld [vmem:[%s1 + $0x4] sm:$0xf]
    %v29 = vld [vmem:[%s1 + $0x8] sm:$0xf]
    %v30 = vld [vmem:[%s1 + $0xc] sm:$0xf]
    %v31 = vld [vmem:[%s1 + $0x10] sm:$0xf]
    %v32 = vld [vmem:[%s1 + $0x14] sm:$0xf]
    %v33 = vld [vmem:[%s1 + $0x18] sm:$0xf]
    %v34 = vld [vmem:[%s1 + $0x1c] sm:$0xf]
    %v35 = vld [vmem:[%s1 + $0x20] sm:$0xf]
    %v36 = vld [vmem:[%s1 + $0x24] sm:$0xf]
    %v37 = vld [vmem:[%s1 + $0x28] sm:$0xf]
    %v38 = vld [vmem:[%s1 + $0x2c] sm:$0xf]
    %v39 = vld [vmem:[%s1 + $0x30] sm:$0xf]
    %v40 = vld [vmem:[%s1 + $0x34] sm:$0xf]
    %v41 = vld [vmem:[%s1 + $0x38] sm:$0xf]
    %v42 = vld [vmem:[%s1 + $0x3c] sm:$0xf]
    %v43 = vld [vmem:[%s1 + $0x40] sm:$0xf]
    %v44 = vld [vmem:[%s1 + $0x44] sm:$0xf]
    %v45 = vld [vmem:[%s1 + $0x48] sm:$0xf]
    %v46 = vld [vmem:[%s1 + $0x4c] sm:$0xf]
    %v47 = vld [vmem:[%s1 + $0x50] sm:$0xf]
    %v48 = vld [vmem:[%s1 + $0x54] sm:$0xf]
    %v49 = vld [vmem:[%s1 + $0x58] sm:$0xf]
    %v50 = vld [vmem:[%s1 + $0x5c] sm:$0xf]
    %v51 = vld [vmem:[%s1 + $0x60] sm:$0xf]
    %v52 = vld [vmem:[%s1 + $0x64] sm:$0xf]
    %v53 = vld [vmem:[%s1 + $0x68] sm:$0xf]
    %v54 = vld [vmem:[%s1 + $0x6c] sm:$0xf]
    %v55 = vld [vmem:[%s1 + $0x70] sm:$0xf]
    %v56 = vld [vmem:[%s1 + $0x74] sm:$0xf]
    %v57 = vld [vmem:[%s1 + $0x78] sm:$0xf]
    %v58 = vld [vmem:[%s1 + $0x7c] sm:$0xf]
    %v59 = vld [vmem:[%s2] sm:$0x1]
    %v61 = vperm.slane %v59, 0
    %v69 = vunpack.c.l.b16 %v21
    %v70 = vunpack.c.h.b16 %v21
    %v71 = vunpack.c.l.b16 %v22
    %v72 = vunpack.c.h.b16 %v22
    %v73 = vunpack.c.l.b16 %v23
    %v74 = vunpack.c.h.b16 %v23
    %v75 = vunpack.c.l.b16 %v24
    %v76 = vunpack.c.h.b16 %v24
    %v77 = vunpack.c.l.b16 %v25
    %v78 = vunpack.c.h.b16 %v25
    %v79 = vunpack.c.l.b16 %v26
    %v80 = vunpack.c.h.b16 %v26
    %v81 = vpack.c.b16 %v71, %v69
    %v82 = vpack.c.b16 %v72, %v70
    %v83 = vpack.c.b16 %v75, %v73
    %v84 = vpack.c.b16 %v76, %v74
    %v85 = vpack.c.b16 %v79, %v77
    %v86 = vpack.c.b16 %v80, %v78
    %v125 = vunpack.c.l.b16 %v27
    %v126 = vunpack.c.l.b16 %v28
    %v127 = vunpack.c.l.b16 %v29
    %v128 = vunpack.c.l.b16 %v30
    %v129 = vunpack.c.l.b16 %v31
    %v130 = vunpack.c.l.b16 %v32
    %v131 = vunpack.c.l.b16 %v33
    %v132 = vunpack.c.l.b16 %v34
    %v133 = vunpack.c.l.b16 %v35
    %v134 = vunpack.c.l.b16 %v36
    %v135 = vunpack.c.l.b16 %v37
    %v136 = vunpack.c.l.b16 %v38
    %v137 = vunpack.c.l.b16 %v39
    %v138 = vunpack.c.l.b16 %v40
    %v139 = vunpack.c.l.b16 %v41
    %v140 = vunpack.c.l.b16 %v42
    %v141 = vunpack.c.l.b16 %v43
    %v142 = vunpack.c.l.b16 %v44
    %v143 = vunpack.c.l.b16 %v45
    %v144 = vunpack.c.l.b16 %v46
    %v145 = vunpack.c.l.b16 %v47
    %v146 = vunpack.c.l.b16 %v48
    %v147 = vunpack.c.l.b16 %v49
    %v148 = vunpack.c.l.b16 %v50
    %v149 = vunpack.c.l.b16 %v51
    %v150 = vunpack.c.l.b16 %v52
    %v151 = vunpack.c.l.b16 %v53
    %v152 = vunpack.c.l.b16 %v54
    %v153 = vunpack.c.l.b16 %v55
    %v154 = vunpack.c.l.b16 %v56
    %v155 = vunpack.c.l.b16 %v57
    %v156 = vunpack.c.l.b16 %v58
    %v157 = vpack.c.b16 %v126, %v125
    %v158 = vpack.c.b16 %v128, %v127
    %v159 = vpack.c.b16 %v130, %v129
    %v160 = vpack.c.b16 %v132, %v131
    %v161 = vpack.c.b16 %v134, %v133
    %v162 = vpack.c.b16 %v136, %v135
    %v163 = vpack.c.b16 %v138, %v137
    %v164 = vpack.c.b16 %v140, %v139
    %v165 = vpack.c.b16 %v142, %v141
    %v166 = vpack.c.b16 %v144, %v143
    %v167 = vpack.c.b16 %v146, %v145
    %v168 = vpack.c.b16 %v148, %v147
    %v169 = vpack.c.b16 %v150, %v149
    %v170 = vpack.c.b16 %v152, %v151
    %v171 = vpack.c.b16 %v154, %v153
    %v172 = vpack.c.b16 %v156, %v155
    %189 = vmatpush.bf16.msra.mxu0 %v164
    %190 = vmatpush.bf16.msra.mxu0 %v163
    %191 = vmatpush.bf16.msra.mxu0 %v162
    %192 = vmatpush.bf16.msra.mxu0 %v161
    %193 = vmatpush.bf16.msra.mxu0 %v160
    %194 = vmatpush.bf16.msra.mxu0 %v159
    %195 = vmatpush.bf16.msra.mxu0 %v158
    %196 = vmatpush.bf16.msra.mxu0 %v157
    %197 = vmatmul.bf16.gmra.mxu0 %v81
    %v198 = vpop.f32.mrf.mxu0
    %v199 = vadd.f32 %v61, %v198
    %v200 = vpop.f32.mrf.mxu0
    %v201 = vadd.f32 %v61, %v200
    %202 = vmatmul.bf16.gmra.mxu0 %v83
    %v203 = vpop.f32.mrf.mxu0
    %v204 = vadd.f32 %v61, %v203
    %v205 = vpop.f32.mrf.mxu0
    %v206 = vadd.f32 %v61, %v205
    %207 = vmatmul.bf16.gmra.mxu0 %v85
    %v208 = vpop.f32.mrf.mxu0
    %v209 = vadd.f32 %v61, %v208
    %v210 = vpop.f32.mrf.mxu0
    %v211 = vadd.f32 %v61, %v210
    %212 = vdwg.mxu0
    %213 = vmatpush.bf16.msra.mxu0 %v172
    %214 = vmatpush.bf16.msra.mxu0 %v171
    %215 = vmatpush.bf16.msra.mxu0 %v170
    %216 = vmatpush.bf16.msra.mxu0 %v169
    %217 = vmatpush.bf16.msra.mxu0 %v168
    %218 = vmatpush.bf16.msra.mxu0 %v167
    %219 = vmatpush.bf16.msra.mxu0 %v166
    %220 = vmatpush.bf16.msra.mxu0 %v165
    %221 = vmatmul.bf16.gmra.mxu0 %v82
    %v222 = vpop.f32.mrf.mxu0
    %v223 = vadd.f32 %v199, %v222
    %v224 = vpop.f32.mrf.mxu0
    %v225 = vadd.f32 %v201, %v224
    %226 = vmatmul.bf16.gmra.mxu0 %v84
    %v227 = vpop.f32.mrf.mxu0
    %v228 = vadd.f32 %v204, %v227
    %v229 = vpop.f32.mrf.mxu0
    %v230 = vadd.f32 %v206, %v229
    %231 = vmatmul.bf16.gmra.mxu0 %v86
    %v232 = vpop.f32.mrf.mxu0
    %v233 = vadd.f32 %v209, %v232
    %v234 = vpop.f32.mrf.mxu0
    %v235 = vadd.f32 %v211, %v234
    %236 = vdwg.mxu0
    %v237 = vld [vmem:[%s3] sm:$0xff]
    %v238 = vld [vmem:[%s3 + $0x8] sm:$0xff]
    %v239 = vld [vmem:[%s3 + $0x10] sm:$0xff]
    %v240 = vld [vmem:[%s3 + $0x18] sm:$0xff]
    %v241 = vld [vmem:[%s3 + $0x20] sm:$0xff]
    %v242 = vld [vmem:[%s3 + $0x28] sm:$0xff]
    %v243 = vadd.f32 %v223, %v237
    %v244 = vadd.f32 %v225, %v238
    %v245 = vadd.f32 %v228, %v239
    %v246 = vadd.f32 %v230, %v240
    %v247 = vadd.f32 %v233, %v241
    %v248 = vadd.f32 %v235, %v242
    %vm249 = vcmp.ge.f32.partialorder %v243, 0.0
    %vm250 = vcmp.ge.f32.partialorder %v244, 0.0
    %vm251 = vcmp.ge.f32.partialorder %v245, 0.0
    %vm252 = vcmp.ge.f32.partialorder %v246, 0.0
    %vm253 = vcmp.ge.f32.partialorder %v247, 0.0
    %vm254 = vcmp.ge.f32.partialorder %v248, 0.0
    %v255 = vmul.f32 %v243, 0.1
    %v256 = vmul.f32 %v244, 0.1
    %v257 = vmul.f32 %v245, 0.1
    %v258 = vmul.f32 %v246, 0.1
    %v259 = vmul.f32 %v247, 0.1
    %v260 = vmul.f32 %v248, 0.1
    %v261 = vsel %vm249, %v243, %v255
    %v262 = vsel %vm250, %v244, %v256
    %v263 = vsel %vm251, %v245, %v257
    %v264 = vsel %vm252, %v246, %v258
    %v265 = vsel %vm253, %v247, %v259
    %v266 = vsel %vm254, %v248, %v260
    %v267 = vld [vmem:[%s4] sm:$0xff]
    %v268 = vld [vmem:[%s4 + $0x8] sm:$0xff]
    %v269 = vld [vmem:[%s4 + $0x10] sm:$0xff]
    %v270 = vld [vmem:[%s4 + $0x18] sm:$0xff]
    %v271 = vld [vmem:[%s4 + $0x20] sm:$0xff]
    %v272 = vld [vmem:[%s4 + $0x28] sm:$0xff]
    %274 = vset.pattern.permute.xlu0 0
    %275 = vperm.xlu0 %274, %v267
    %v276 = vpop.permute.xlu0 %275
    %279 = vset.pattern.permute.xlu0 0
    %280 = vperm.xlu0 %279, %v268
    %v281 = vpop.permute.xlu0 %280
    %284 = vset.pattern.permute.xlu0 0
    %285 = vperm.xlu0 %284, %v269
    %v286 = vpop.permute.xlu0 %285
    %289 = vset.pattern.permute.xlu0 0
    %290 = vperm.xlu0 %289, %v270
    %v291 = vpop.permute.xlu0 %290
    %294 = vset.pattern.permute.xlu0 0
    %295 = vperm.xlu0 %294, %v271
    %v296 = vpop.permute.xlu0 %295
    %299 = vset.pattern.permute.xlu0 0
    %300 = vperm.xlu0 %299, %v272
    %v301 = vpop.permute.xlu0 %300
    %v303 = vmul.f32 %v261, %v276
    %v304 = vmul.f32 %v262, %v281
    %v305 = vmul.f32 %v263, %v286
    %v306 = vmul.f32 %v264, %v291
    %v307 = vmul.f32 %v265, %v296
    %v308 = vmul.f32 %v266, %v301
    %v309 = vpack.c.bf16 %v303, %v303
    %v310 = vpack.c.bf16 %v304, %v304
    %v311 = vpack.c.bf16 %v305, %v305
    %v312 = vpack.c.bf16 %v306, %v306
    %v313 = vpack.c.bf16 %v307, %v307
    %v314 = vpack.c.bf16 %v308, %v308
    %315 = vst [vmem:[#allocation2] sm:$0xf] %v309
    %316 = vst [vmem:[#allocation2 + $0x4] sm:$0xf] %v310
    %317 = vst [vmem:[#allocation2 + $0x8] sm:$0xf] %v311
    %318 = vst [vmem:[#allocation2 + $0xc] sm:$0xf] %v312
    %319 = vst [vmem:[#allocation2 + $0x10] sm:$0xf] %v313
    %320 = vst [vmem:[#allocation2 + $0x14] sm:$0xf] %v314
    // Predicated region
    $region22: #{fused_conv.1} parent=1 // pred_check
      _
    $region23: #{fused_conv.1} parent=1 // pred_check_branch
      %322 = sbr.rel (0) target = $region25
    $region24: #{fused_conv.1} parent=1 // pred_region
      %324 = vsyncadd [#allocation3], 0
      %s325 = sshll.u32 [#allocation2], 4
      %s326 = int_to_ptr.vmem [resolvable:$true] %s325
      %s327 = sshll.u32 %s5, 4
      %s328 = int_to_ptr.hbm [resolvable:$true] %s327
      %333 = dma.vmem_to_hbm [thread:$0]  %s326, 384, %s328, [#allocation3], 64, 64, 4
    $region25: #{fused_conv.1} parent=1 // pred_fallthru
      _
    // Predicated region
    $region26: #{fused_conv.1} parent=1 // pred_check
      _
    $region27: #{fused_conv.1} parent=1 // pred_check_branch
      %335 = sbr.rel (0) target = $region29
    $region28: #{fused_conv.1} parent=1 // pred_region
      %337 = dma.done [#allocation3], 384
    $region29: #{fused_conv.1} parent=1 // pred_fallthru
      _
    %338 = vsyncpa [#allocation3], 1

</llo_original>
